<compile_context>
chip_gen: v6e
topology: v6e:2x2x1
jax: 0.10.0
libtpu: 0.0.40
codegen_flags: <defaults>
</compile_context>

<pallas_src>
import functools
import math

import jax
import jax.numpy as jnp
from jax import lax
from jax.experimental import pallas as pl
from jax.experimental.pallas import tpu as pltpu


# ---------------------------------------------------------------------------
# helpers
# ---------------------------------------------------------------------------
def _pick_tile(dim, pref, quantum):
    """Largest tile <= pref that divides `dim` and is a multiple of `quantum`,
    else the full dim (full-extent blocks always satisfy the (8,128) rule)."""
    if dim <= pref:
        return dim
    t = (pref // quantum) * quantum
    while t >= quantum:
        if dim % t == 0:
            return t
        t -= quantum
    return dim


@functools.lru_cache(maxsize=1)
def _vmem_limit_bytes():
    """Per-chip scoped-VMEM limit: generous on v5e/v6e (128 MiB physical),
    conservative on v7x (64 MiB physical)."""
    default_cap = 64 << 20
    try:
        info = pltpu.get_tpu_info()
        cap = int(getattr(info, "vmem_capacity_bytes", default_cap))
    except Exception:
        cap = default_cap
    return int(min(max(cap - (16 << 20), 32 << 20), 112 << 20))


# ---------------------------------------------------------------------------
# Kernel 1: bias-free linear  y = x @ Wt   (x: [tm, K], Wt: [K, tn] -> y: [tm, tn])
# Weights are pre-transposed to [in, out] outside the kernel, so the contraction
# is the canonical (((1,),(0,)),((),())) form -- MXU is fed directly.
# ---------------------------------------------------------------------------
def _matmul_kernel(x_ref, w_ref, o_ref):
    o_ref[...] = lax.dot_general(
        x_ref[...], w_ref[...],
        dimension_numbers=(((1,), (0,)), ((), ())),
        preferred_element_type=jnp.float32,
    ).astype(o_ref.dtype)


def linear_nobias(x2d, w_t, *, tm_pref=256, tn_pref=256):
    """Tiled y = x @ Wt.  x2d: [M, K], w_t: [K, N] (already transposed)."""
    M, K = x2d.shape
    K2, N = w_t.shape
    assert K == K2
    tm = _pick_tile(M, tm_pref, 8)
    tn = _pick_tile(N, tn_pref, 128)
    # NOTE: K is kept whole (fine for typical d_model).  For very large D on
    # v7x, add a K grid axis with a f32 VMEM accumulator (pl.when init/finalize).
    return pl.pallas_call(
        _matmul_kernel,
        out_shape=jax.ShapeDtypeStruct((M, N), x2d.dtype),
        grid=(M // tm, N // tn),
        in_specs=[
            pl.BlockSpec((tm, K), lambda i, j: (i, 0)),
            pl.BlockSpec((K, tn), lambda i, j: (0, j)),
        ],
        out_specs=pl.BlockSpec((tm, tn), lambda i, j: (i, j)),
        compiler_params=pltpu.CompilerParams(
            dimension_semantics=("parallel", "parallel"),
            vmem_limit_bytes=_vmem_limit_bytes(),
        ),
        cost_estimate=pl.CostEstimate(
            flops=2 * M * N * K, transcendentals=0,
            bytes_accessed=4 * (M * K + N * K + M * N)),
    )(x2d, w_t)


def qkv_projection_fused(x2d, w_qkv_t, *, tm_pref=256, tn_pref=256):
    """Fused Q/K/V projection (self-attention): one pallas_call, the x tile is
    DMA'd once per m-tile and reused for all three weights.
    x2d: [M, K], w_qkv_t: [3, K, N]  ->  [3, M, N]."""
    M, K = x2d.shape
    _, K2, N = w_qkv_t.shape
    assert K == K2
    tm = _pick_tile(M, tm_pref, 8)
    tn = _pick_tile(N, tn_pref, 128)
    return pl.pallas_call(
        _matmul_kernel,
        out_shape=jax.ShapeDtypeStruct((3, M, N), x2d.dtype),
        grid=(M // tm, 3, N // tn),  # p, j inner: x block index constant -> no re-DMA
        in_specs=[
            pl.BlockSpec((tm, K), lambda i, p, j: (i, 0)),
            pl.BlockSpec((None, K, tn), lambda i, p, j: (p, 0, j)),
        ],
        out_specs=pl.BlockSpec((None, tm, tn), lambda i, p, j: (p, i, j)),
        compiler_params=pltpu.CompilerParams(
            dimension_semantics=("parallel", "parallel", "parallel"),
            vmem_limit_bytes=_vmem_limit_bytes(),
        ),
        cost_estimate=pl.CostEstimate(
            flops=2 * 3 * M * N * K, transcendentals=0,
            bytes_accessed=4 * (M * K + 3 * N * K + 3 * M * N)),
    )(x2d, w_qkv_t)


# ---------------------------------------------------------------------------
# Kernel 2: flash-style multi-head attention with fused output projection.
#   valid_ref : SMEM int32 [B*nq*nk]  (1 = tile has >=1 unmasked entry)
#   q_ref     : [tq, D], k_ref/v_ref: [tkv, D], mask_ref: [tq, tkv] int8
#   wo_ref    : [D, D] resident in VMEM, o_ref: [tq, D]
#   scratch   : m/l [h, tq, 1] f32, acc [tq, D] f32
# ---------------------------------------------------------------------------
def _attention_kernel(valid_ref, q_ref, k_ref, v_ref, mask_ref, wo_ref, o_ref,
                      m_sc, l_sc, acc_sc, *, h, d_k):
    b = pl.program_id(0)
    qi = pl.program_id(1)
    ki = pl.program_id(2)
    nq = pl.num_programs(1)
    nk = pl.num_programs(2)

    @pl.when(ki == 0)
    def _init():
        m_sc[...] = jnp.full(m_sc.shape, -jnp.inf, dtype=jnp.float32)
        l_sc[...] = jnp.zeros(l_sc.shape, dtype=jnp.float32)
        acc_sc[...] = jnp.zeros(acc_sc.shape, dtype=jnp.float32)

    # Skip fully-masked kv tiles entirely (validity table is scalar-prefetched).
    @pl.when(valid_ref[(b * nq + qi) * nk + ki] != 0)
    def _compute():
        q = q_ref[...]                      # input dtype (scale folded into w_q)
        k = k_ref[...]
        v = v_ref[...]
        masked = mask_ref[...] == 0         # True where attention is disallowed
        neg_big = jnp.float32(-1.0e9)

        # Static head loop: plain 2-D MXU matmuls per head; running stats live
        # in VMEM scratch across the kv grid axis.  (Watch vreg pressure for
        # very large h; process 2 heads per step if the bundle dump shows spills.)
        for head in range(h):
            lo = head * d_k
            qh = q[:, lo:lo + d_k]                               # [tq, d_k]
            kh = k[:, lo:lo + d_k]                               # [tkv, d_k]
            vh = v[:, lo:lo + d_k]                               # [tkv, d_k]

            s = lax.dot_general(                                 # q @ k.T -> [tq, tkv]
                qh, kh, dimension_numbers=(((1,), (1,)), ((), ())),
                preferred_element_type=jnp.float32)
            s = jnp.where(masked, neg_big, s)                    # masked_fill(mask==0, -1e9)

            m_prev = m_sc[head]                                  # [tq, 1]
            m_new = jnp.maximum(m_prev, jnp.max(s, axis=-1, keepdims=True))
            alpha = jnp.exp(m_prev - m_new)
            p = jnp.exp(s - m_new)                               # [tq, tkv]
            l_sc[head] = alpha * l_sc[head] + jnp.sum(p, axis=-1, keepdims=True)
            pv = jnp.dot(p.astype(vh.dtype), vh,
                         preferred_element_type=jnp.float32)      # [tq, d_k]
            acc_sc[:, lo:lo + d_k] = alpha * acc_sc[:, lo:lo + d_k] + pv
            m_sc[head] = m_new

    @pl.when(ki == nk - 1)
    def _finalize():
        # Per-head softmax normalization in place (EUP reciprocal ~free),
        # then one fused [tq, D] x [D, D] output projection and a single
        # lane-dense [tq, D] store.
        for head in range(h):
            lo = head * d_k
            inv_l = pl.reciprocal(l_sc[head], approx=True)       # [tq, 1]
            acc_sc[:, lo:lo + d_k] = acc_sc[:, lo:lo + d_k] * inv_l
        o_ref[...] = lax.dot_general(
            acc_sc[...].astype(wo_ref.dtype), wo_ref[...],
            dimension_numbers=(((1,), (0,)), ((), ())),
            preferred_element_type=jnp.float32).astype(o_ref.dtype)


def _attention_call(h, d_k, B, Sq, Skv, D, tq, tkv, out_dtype,
                    qkv_specs, qkv_args, mask, w_o_t):
    nq, nk = Sq // tq, Skv // tkv

    # int8 mask (4x less DMA than int32) + per-tile validity table for skipping.
    mask_b = jnp.broadcast_to(mask, (B, 1, Sq, Skv))
    mask_i8 = (mask_b != 0).astype(jnp.int8)
    valid = (mask_i8[:, 0].reshape(B, nq, tq, nk, tkv) != 0).any(axis=(2, 4))
    valid = valid.astype(jnp.int32).reshape(-1)                  # [B*nq*nk] -> SMEM

    kernel = functools.partial(_attention_kernel, h=h, d_k=d_k)
    grid_spec = pltpu.PrefetchScalarGridSpec(
        num_scalar_prefetch=1,
        grid=(B, nq, nk),
        in_specs=[
            *qkv_specs,
            pl.BlockSpec((None, None, tq, tkv), lambda b, qi, ki, v_: (b, 0, qi, ki)),
            pl.BlockSpec((D, D), lambda b, qi, ki, v_: (0, 0)),   # w_o resident
        ],
        out_specs=pl.BlockSpec((None, tq, D), lambda b, qi, ki, v_: (b, qi, 0)),
        scratch_shapes=[
            pltpu.VMEM((h, tq, 1), jnp.float32),     # running max
            pltpu.VMEM((h, tq, 1), jnp.float32),     # running sum
            pltpu.VMEM((tq, D), jnp.float32),        # output accumulator (lane-dense)
        ],
    )
    return pl.pallas_call(
        kernel,
        out_shape=jax.ShapeDtypeStruct((B, Sq, D), out_dtype),
        grid_spec=grid_spec,
        compiler_params=pltpu.CompilerParams(
            dimension_semantics=("parallel", "parallel", "arbitrary"),
            vmem_limit_bytes=_vmem_limit_bytes(),
        ),
        cost_estimate=pl.CostEstimate(
            flops=B * (4 * Sq * Skv * D + 2 * Sq * D * D),
            transcendentals=B * h * Sq * Skv,
            bytes_accessed=4 * (4 * B * Sq * D + D * D) + B * Sq * Skv),
    )(valid, *qkv_args, mask_i8, w_o_t)


def attention_from_stacked(qkv, mask, w_o_t, h, *, tq_pref=256, tkv_pref=512):
    """qkv: [3, B, S, D] stacked projections (self-attention fused path)."""
    _, B, S, D = qkv.shape
    d_k = D // h
    tq = _pick_tile(S, tq_pref, 8)
    tkv = _pick_tile(S, tkv_pref, 128)
    specs = [
        pl.BlockSpec((None, None, tq, D), lambda b, qi, ki, v_: (0, b, qi, 0)),
        pl.BlockSpec((None, None, tkv, D), lambda b, qi, ki, v_: (1, b, ki, 0)),
        pl.BlockSpec((None, None, tkv, D), lambda b, qi, ki, v_: (2, b, ki, 0)),
    ]
    return _attention_call(h, d_k, B, S, S, D, tq, tkv, qkv.dtype,
                           specs, (qkv, qkv, qkv), mask, w_o_t)


def attention_separate(qp, kp, vp, mask, w_o_t, h, *, tq_pref=256, tkv_pref=512):
    """qp: [B, Sq, D], kp/vp: [B, Skv, D] projections (cross-attention path)."""
    B, Sq, D = qp.shape
    Skv = kp.shape[1]
    d_k = D // h
    tq = _pick_tile(Sq, tq_pref, 8)
    tkv = _pick_tile(Skv, tkv_pref, 128)
    specs = [
        pl.BlockSpec((None, tq, D), lambda b, qi, ki, v_: (b, qi, 0)),
        pl.BlockSpec((None, tkv, D), lambda b, qi, ki, v_: (b, ki, 0)),
        pl.BlockSpec((None, tkv, D), lambda b, qi, ki, v_: (b, ki, 0)),
    ]
    return _attention_call(h, d_k, B, Sq, Skv, D, tq, tkv, qp.dtype,
                           specs, (qp, kp, vp), mask, w_o_t)


# ---------------------------------------------------------------------------
# Parameter prep (one-time) + full MultiHeadAttentionBlock.forward
#   q/k/v: [B, S, d_model]; mask: broadcastable to [B, 1, Sq, Skv] (0 == masked);
#   weights are PyTorch-convention [out_features, in_features], no bias.
# ---------------------------------------------------------------------------
def prepare_params(w_q, w_k, w_v, w_o, h):
    """Transpose to [in, out], fold 1/sqrt(d_k) into w_q, pre-stack QKV."""
    d_model = w_q.shape[0]
    d_k = d_model // h
    scale = 1.0 / math.sqrt(d_k)
    w_q_t = (w_q * jnp.asarray(scale, w_q.dtype)).T
    w_k_t = w_k.T
    w_v_t = w_v.T
    w_o_t = w_o.T
    return dict(h=h, w_q_t=w_q_t, w_k_t=w_k_t, w_v_t=w_v_t, w_o_t=w_o_t,
                w_qkv_t=jnp.stack([w_q_t, w_k_t, w_v_t], axis=0))


def mha_forward(q, k, v, mask, params, *, fuse_qkv=None):
    h = params["h"]
    B, S, D = q.shape
    if fuse_qkv is None:
        fuse_qkv = (q is k) and (k is v)   # Python-level identity (not under jit)

    if fuse_qkv:
        qkv = qkv_projection_fused(q.reshape(B * S, D), params["w_qkv_t"])
        return attention_from_stacked(qkv.reshape(3, B, S, D), mask,
                                      params["w_o_t"], h)
    qp = linear_nobias(q.reshape(B * S, D), params["w_q_t"]).reshape(B, S, D)
    kp = linear_nobias(k.reshape(-1, D), params["w_k_t"]).reshape(k.shape)
    vp = linear_nobias(v.reshape(-1, D), params["w_v_t"]).reshape(v.shape)
    return attention_separate(qp, kp, vp, mask, params["w_o_t"], h)


# ---------------------------------------------------------------------------
# Pure-JAX reference (for correctness check)
# ---------------------------------------------------------------------------
def mha_reference(q, k, v, mask, w_q, w_k, w_v, w_o, h):
    B, S, D = q.shape
    d_k = D // h
    Q = (q @ w_q.T).reshape(B, S, h, d_k).transpose(0, 2, 1, 3)
    K = (k @ w_k.T).reshape(B, -1, h, d_k).transpose(0, 2, 1, 3)
    V = (v @ w_v.T).reshape(B, -1, h, d_k).transpose(0, 2, 1, 3)
    scores = Q @ jnp.swapaxes(K, -2, -1) / math.sqrt(d_k)
    scores = jnp.where(mask == 0, -1.0e9, scores)
    p = jax.nn.softmax(scores, axis=-1)
    x = (p @ V).transpose(0, 2, 1, 3).reshape(B, S, D)
    return x @ w_o.T


if __name__ == "__main__":
    B, S, d_model, h = 2, 8, 32, 4

    key = jax.random.PRNGKey(0)
    kx, kq, kk, kv, kwq, kwk, kwv, kwo = jax.random.split(key, 8)

    # PyTorch Linear weight shape: [out_features, in_features].
    wscale = 1.0 / math.sqrt(d_model)
    w_q = jax.random.uniform(kwq, (d_model, d_model), jnp.float32, -wscale, wscale)
    w_k = jax.random.uniform(kwk, (d_model, d_model), jnp.float32, -wscale, wscale)
    w_v = jax.random.uniform(kwv, (d_model, d_model), jnp.float32, -wscale, wscale)
    w_o = jax.random.uniform(kwo, (d_model, d_model), jnp.float32, -wscale, wscale)

    params = prepare_params(w_q, w_k, w_v, w_o, h)

    # Causal mask [B, 1, S, S]: 1 = attend, 0 = masked.
    mask = jnp.broadcast_to(
        jnp.tril(jnp.ones((S, S), dtype=jnp.int32))[None, None], (B, 1, S, S))

    # 1) self-attention (fused QKV projection + fused output projection)
    x = jax.random.normal(kx, (B, S, d_model), dtype=jnp.float32)
    out_self = jax.block_until_ready(mha_forward(x, x, x, mask, params))
    ref_self = mha_reference(x, x, x, mask, w_q, w_k, w_v, w_o, h)
    assert out_self.shape == (B, S, d_model)
    assert jnp.allclose(out_self, ref_self, atol=5e-3, rtol=5e-3), "self-attn mismatch"

    # 2) cross-attention style (distinct q/k/v path)
    q = jax.random.normal(kq, (B, S, d_model), dtype=jnp.float32)
    k = jax.random.normal(kk, (B, S, d_model), dtype=jnp.float32)
    v = jax.random.normal(kv, (B, S, d_model), dtype=jnp.float32)
    out_x = jax.block_until_ready(mha_forward(q, k, v, mask, params))
    ref_x = mha_reference(q, k, v, mask, w_q, w_k, w_v, w_o, h)
    assert out_x.shape == (B, S, d_model)
    assert jnp.allclose(out_x, ref_x, atol=5e-3, rtol=5e-3), "cross-attn mismatch"

    # 3) bf16 MXU-operand path (loose tolerance; accumulation stays f32 in-kernel)
    params_bf16 = prepare_params(w_q.astype(jnp.bfloat16), w_k.astype(jnp.bfloat16),
                                 w_v.astype(jnp.bfloat16), w_o.astype(jnp.bfloat16), h)
    out_bf16 = jax.block_until_ready(
        mha_forward(*(x.astype(jnp.bfloat16),) * 3, mask, params_bf16))
    assert out_bf16.dtype == jnp.bfloat16
    assert jnp.isfinite(out_bf16.astype(jnp.float32)).all()
    assert jnp.allclose(out_bf16.astype(jnp.float32), ref_self, atol=0.15, rtol=0.15), \
        "bf16 self-attn mismatch"

    print("KERNEL_OK")
</pallas_src>

<mosaic_0001>
module attributes {stable_mosaic.version = 11 : i64} {
  func.func @_matmul_kernel(%arg0: i32, %arg1: i32, %arg2: i32, %arg3: memref<16x32xf32, #tpu.memory_space<vmem>>, %arg4: memref<1x32x32xf32, #tpu.memory_space<vmem>>, %arg5: memref<1x16x32xf32, #tpu.memory_space<vmem>>) attributes {dimension_semantics = [#tpu.dimension_semantics<parallel>, #tpu.dimension_semantics<parallel>, #tpu.dimension_semantics<parallel>], iteration_bounds = array<i64: 1, 3, 1>, scalar_prefetch = 0 : i64, scratch_operands = 0 : i64, tpu.core_type = #tpu.core_type<tc>, window_params = [{transform_indices = @transform_0, window_bounds = array<i64: 16, 32>}, {transform_indices = @transform_1, window_bounds = array<i64: 1, 32, 32>}, {transform_indices = @transform_2, window_bounds = array<i64: 1, 16, 32>}]} {
    %c0 = arith.constant 0 : index
    %c0_0 = arith.constant 0 : index
    %0 = vector.load %arg3[%c0, %c0_0] : memref<16x32xf32, #tpu.memory_space<vmem>>, vector<16x32xf32>
    %c0_1 = arith.constant 0 : index
    %c0_2 = arith.constant 0 : index
    %c0_3 = arith.constant 0 : index
    %1 = vector.load %arg4[%c0_1, %c0_2, %c0_3] : memref<1x32x32xf32, #tpu.memory_space<vmem>>, vector<1x32x32xf32>
    %2 = vector.shape_cast %1 : vector<1x32x32xf32> to vector<32x32xf32>
    %cst = arith.constant dense<0.000000e+00> : vector<16x32xf32>
    %3 = tpu.matmul %0, %2, %cst {dimension_numbers = #tpu.dot_dimension_numbers<[1], [0], [0], [1], [0, 0, 1, 1], [], []>} : vector<16x32xf32>, vector<32x32xf32>, vector<16x32xf32> -> vector<16x32xf32>
    %c0_4 = arith.constant 0 : index
    %c0_5 = arith.constant 0 : index
    %c0_6 = arith.constant 0 : index
    %4 = vector.load %arg5[%c0_4, %c0_5, %c0_6] : memref<1x16x32xf32, #tpu.memory_space<vmem>>, vector<1x16x32xf32>
    %5 = vector.shape_cast %4 : vector<1x16x32xf32> to vector<16x32xf32>
    %6 = vector.shape_cast %3 : vector<16x32xf32> to vector<1x16x32xf32>
    tpu.vector_store %arg5[%c0_4, %c0_5, %c0_6], %6 {strides = array<i32>} : memref<1x16x32xf32, #tpu.memory_space<vmem>>, vector<1x16x32xf32>,
    return
  }
  func.func @transform_0(%arg0: i32, %arg1: i32, %arg2: i32) -> (i32, i32) {
    %c0_i32 = arith.constant 0 : i32
    %c0_i32_0 = arith.constant 0 : i32
    return %arg0, %c0_i32 : i32, i32
  }
  func.func @transform_1(%arg0: i32, %arg1: i32, %arg2: i32) -> (i32, i32, i32) {
    %c0_i32 = arith.constant 0 : i32
    %c0_i32_0 = arith.constant 0 : i32
    return %arg1, %c0_i32, %arg2 : i32, i32, i32
  }
  func.func @transform_2(%arg0: i32, %arg1: i32, %arg2: i32) -> (i32, i32, i32) {
    %c0_i32 = arith.constant 0 : i32
    return %arg1, %arg0, %arg2 : i32, i32, i32
  }
}

</mosaic_0001>

<llo_original>
// kernel: tpu_custom_call.1
$region0: #{tpu_custom_call.1}
  #allocation0 [shape = 'u32[]', space=smem, size = 0x4, offset = 0x4, fixed_abs, tag = 'smem constant byte address 0x4 - core index']
  #allocation1 [shape = 'u32[144,128]{1,0:T(1,128)}', space=vmem, size = 0x12000, scoped, tag = 'internal scratch']
  %s0 = inlined_call_operand.hbm [shape: f32[16,32], index: 0, kind: input, shape index: {}]
  %s1 = inlined_call_operand.hbm [shape: f32[3,32,32], index: 1, kind: input, shape index: {}]
  %s2 = inlined_call_operand.hbm [shape: f32[3,16,32], index: 2, kind: output, shape index: {}]
  %s3 = sld [smem:[#allocation0]]
  $region49: #{tpu_custom_call.1} parent=0
    _
  %s5 = ssub.s32 1, %s3
  %s6 = scalar_select 0, %s5, %s3
  $region1: #{tpu_custom_call.1} parent=0
    #allocation2 [shape = 'u8[8192]{0}', space=vmem, size = 0x2000, scoped, tag = 'input window, operand 0, single buffered']
    #allocation3 [shape = 's32[2]{0}', space=sflag, size = 0x8, scoped, tag = 'scoped memory for tpu_custom_call.1']
    #allocation4 [shape = 's32[2]{0}', space=sflag, size = 0x8, scoped, tag = 'scoped memory for tpu_custom_call.1']
    #allocation5 [shape = 'u8[32768]{0}', space=vmem, size = 0x8000, scoped, tag = 'input window, operand 1']
    #allocation6 [shape = 's32[2]{0}', space=sflag, size = 0x8, scoped, tag = 'scoped memory for tpu_custom_call.1']
    #allocation7 [shape = 'u8[16384]{0}', space=vmem, size = 0x4000, scoped, tag = 'output window, operand 0']
    %7 = vsyncpa [#allocation3], 0
    %8 = vsyncpa [#allocation6], 0
    %s9 = scalar_lea.sflag [#allocation6], 1
    %10 = vsyncpa %s9, 0
    %11 = vsyncpa [#allocation4], 0
    %s12 = scalar_lea.sflag [#allocation4], 1
    %13 = vsyncpa %s12, 0
    loop: start=0, step=1, limit=5
    $region2: #{tpu_custom_call.1} parent=1 // loop_pre_header
      _
    $region3: #{tpu_custom_call.1} parent=1 // loop_header
      %s15 = sphi 0, %s19
      %p16 = scmp.ge.s32.totalorder %s15, 5
      %s22 = sphi 0, %s41
      %s23 = sphi 0, %s37
      %s24 = sphi 0, %s33
      %s25 = sphi 0, %s22
      %s26 = sphi 0, %s23
      %s27 = sphi 0, %s24
      %s28 = sphi 0, %s25
      %s29 = sphi 0, %s26
      %s30 = sphi 0, %s27
      %s44 = sphi 0, %s46
      %s47 = sphi 0, %s44
      %s48 = sphi 0, %s47
      %s64 = sphi 0, %s48
      %s72 = sphi 0, %s74
      %s75 = sphi 0, %s72
      %s76 = sphi 0, %s75
      %s92 = sphi 0, %s76
      %s102 = sphi 0, %s104
      %s105 = sphi 0, %s102
      %s106 = sphi 0, %s105
      %s122 = sphi 0, %s106
    $region4: #{tpu_custom_call.1} parent=1 // loop_header_branch
      %18 = sbr.rel (%p16) target = $region8
    $region5: #{tpu_custom_call.1} parent=1 // loop_body
      %s20 = ssub.s32 %s15, 1
      %s21 = ssub.s32 %s15, 2
      %s31 = sadd.s32 1, %s24
      %p32 = scmp.ge.s32.totalorder %s31, 1
      %s33 = scalar_select %p32, 0, %s31
      %s34 = sadd.s32 1, %s23
      %s35 = scalar_select %p32, %s34, %s23
      %p36 = scmp.ge.s32.totalorder %s35, 3
      %s37 = scalar_select %p36, 0, %s35
      %s38 = sadd.s32 1, %s22
      %s39 = scalar_select %p36, %s38, %s22
      %p40 = scmp.ge.s32.totalorder %s39, 1
      %s41 = scalar_select %p40, 0, %s39
      %s42 = ssub.s32 %s22, %s41
      %p43 = scmp.eq.s32.totalorder %s42, 0
      %s45 = sadd.s32 %s44, 1
      %s46 = scalar_select %p43, %s44, %s45
      %p49 = pneg %p43
      %p50 = scmp.eq.s32.totalorder %s15, 2
      %p51 = por %p49, %p50
      %p52 = scmp.ne.s32.totalorder %s44, %s47
      %p53 = scmp.eq.s32.totalorder %s15, 0
      %p54 = por %p52, %p53
      %p55 = scmp.ne.s32.totalorder %s44, %s47
      %p56 = scmp.eq.s32.totalorder %s20, 2
      %p57 = por %p55, %p56
      %p58 = scmp.ne.s32.totalorder %s47, %s48
      %p59 = scmp.eq.s32.totalorder %s20, 0
      %p60 = por %p58, %p59
      %p61 = scmp.ne.s32.totalorder %s47, %s48
      %p62 = scmp.eq.s32.totalorder %s21, 2
      %p63 = por %p61, %p62
      %p65 = scmp.ne.s32.totalorder %s48, %s64
      %p66 = scmp.eq.s32.totalorder %s21, 0
      %p67 = por %p65, %p66
      %s68 = ssub.s32 %s23, %s37
      %s69 = ssub.s32 %s24, %s33
      %s70 = sor.u32 %s68, %s69
      %p71 = scmp.eq.s32.totalorder %s70, 0
      %s73 = sadd.s32 %s72, 1
      %s74 = scalar_select %p71, %s72, %s73
      %p77 = pneg %p71
      %p78 = scmp.eq.s32.totalorder %s15, 2
      %p79 = por %p77, %p78
      %p80 = scmp.ne.s32.totalorder %s72, %s75
      %p81 = scmp.eq.s32.totalorder %s15, 0
      %p82 = por %p80, %p81
      %p83 = scmp.ne.s32.totalorder %s72, %s75
      %p84 = scmp.eq.s32.totalorder %s20, 2
      %p85 = por %p83, %p84
      %p86 = scmp.ne.s32.totalorder %s75, %s76
      %p87 = scmp.eq.s32.totalorder %s20, 0
      %p88 = por %p86, %p87
      %p89 = scmp.ne.s32.totalorder %s75, %s76
      %p90 = scmp.eq.s32.totalorder %s21, 2
      %p91 = por %p89, %p90
      %p93 = scmp.ne.s32.totalorder %s76, %s92
      %p94 = scmp.eq.s32.totalorder %s21, 0
      %p95 = por %p93, %p94
      %s96 = ssub.s32 %s23, %s37
      %s97 = ssub.s32 %s22, %s41
      %s98 = sor.u32 %s96, %s97
      %s99 = ssub.s32 %s24, %s33
      %s100 = sor.u32 %s98, %s99
      %p101 = scmp.eq.s32.totalorder %s100, 0
      %s103 = sadd.s32 %s102, 1
      %s104 = scalar_select %p101, %s102, %s103
      %p107 = pneg %p101
      %p108 = scmp.eq.s32.totalorder %s15, 2
      %p109 = por %p107, %p108
      %p110 = scmp.ne.s32.totalorder %s102, %s105
      %p111 = scmp.eq.s32.totalorder %s15, 0
      %p112 = por %p110, %p111
      %p113 = scmp.ne.s32.totalorder %s102, %s105
      %p114 = scmp.eq.s32.totalorder %s20, 2
      %p115 = por %p113, %p114
      %p116 = scmp.ne.s32.totalorder %s105, %s106
      %p117 = scmp.eq.s32.totalorder %s20, 0
      %p118 = por %p116, %p117
      %p119 = scmp.ne.s32.totalorder %s105, %s106
      %p120 = scmp.eq.s32.totalorder %s21, 2
      %p121 = por %p119, %p120
      %p123 = scmp.ne.s32.totalorder %s106, %s122
      %p124 = scmp.eq.s32.totalorder %s21, 0
      %p125 = por %p123, %p124
      %p126 = scmp.le.s32.totalorder 1, %s15
      %p127 = scmp.lt.s32.totalorder %s15, 4
      %p128 = pnand %p126, %p127
      %p129 = pneg %p128
      // Predicated region
      $region9: #{tpu_custom_call.1} parent=5 // pred_check
        _
      $region10: #{tpu_custom_call.1} parent=5 // pred_check_branch
        %131 = sbr.rel (%p128) target = $region12
      $region11: #{tpu_custom_call.1} parent=5 // pred_region
        %s132 = ssub.s32 %s15, 1
        // Predicated region
        $region13: #{tpu_custom_call.1} parent=11 // pred_check
          %p133 = pneg %p60
        $region14: #{tpu_custom_call.1} parent=11 // pred_check_branch
          %135 = sbr.rel (%p133) target = $region16
        $region15: #{tpu_custom_call.1} parent=11 // pred_region
          %s136 = smul.u32 2, %s25
          %s138 = ssub.s32 256, 256
          %139 = vsyncadd [#allocation3], %s138
          %s140 = smul.addr %s136, 128
          %s141 = scalar_lea.hbm %s0, %s140
          %s142 = sshll.u32 [#allocation2], 4
          %s143 = int_to_ptr.vmem [resolvable:$true] %s142
          %148 = dma.hbm_to_vmem [thread:$0]  %s141, 256, %s143, [#allocation3], 128, 128, 8
        $region16: #{tpu_custom_call.1} parent=11 // pred_fallthru
          _
      $region12: #{tpu_custom_call.1} parent=5 // pred_fallthru
        _
      %p149 = scmp.lt.s32.totalorder %s15, 3
      // Predicated region
      $region17: #{tpu_custom_call.1} parent=5 // pred_check
        %p150 = pneg %p149
      $region18: #{tpu_custom_call.1} parent=5 // pred_check_branch
        %152 = sbr.rel (%p150) target = $region20
      $region19: #{tpu_custom_call.1} parent=5 // pred_region
        // Predicated region
        $region21: #{tpu_custom_call.1} parent=19 // pred_check
          %p153 = pneg %p82
        $region22: #{tpu_custom_call.1} parent=19 // pred_check_branch
          %155 = sbr.rel (%p153) target = $region24
        $region23: #{tpu_custom_call.1} parent=19 // pred_region
          %s156 = sand.u32 %s72, 1
          %s157 = scalar_lea.sflag [#allocation6], %s156
          %s158 = sand.u32 %s72, 1
          %s159 = smul.addr %s158, 32
          %s160 = scalar_lea.vmem [#allocation5], %s159
          %s162 = ssub.s32 512, 512
          %163 = vsyncadd %s157, %s162
          %s164 = smul.addr %s23, 4
          %s165 = sadd.s32 %s24, %s164
          %s166 = smul.addr %s165, 128
          %s167 = scalar_lea.hbm %s1, %s166
          %s168 = sshll.u32 %s160, 4
          %s169 = int_to_ptr.vmem [resolvable:$true] %s168
          %174 = dma.hbm_to_vmem [thread:$0]  %s167, 512, %s169, %s157, 128, 128, 8
        $region24: #{tpu_custom_call.1} parent=19 // pred_fallthru
          _
      $region20: #{tpu_custom_call.1} parent=5 // pred_fallthru
        _
      %p175 = scmp.le.s32.totalorder 1, %s15
      %p176 = scmp.lt.s32.totalorder %s15, 4
      %p177 = pnand %p175, %p176
      %p178 = pneg %p177
      // Predicated region
      $region25: #{tpu_custom_call.1} parent=5 // pred_check
        _
      $region26: #{tpu_custom_call.1} parent=5 // pred_check_branch
        %180 = sbr.rel (%p177) target = $region28
      $region27: #{tpu_custom_call.1} parent=5 // pred_region
        %s181 = ssub.s32 %s15, 1
        // Predicated region
        $region29: #{tpu_custom_call.1} parent=27 // pred_check
          %p182 = pneg %p60
        $region30: #{tpu_custom_call.1} parent=27 // pred_check_branch
          %184 = sbr.rel (%p182) target = $region32
        $region31: #{tpu_custom_call.1} parent=27 // pred_region
          %185 = dma.done [#allocation3], 256
        $region32: #{tpu_custom_call.1} parent=27 // pred_fallthru
          _
        %s186 = sand.u32 %s75, 1
        %s187 = scalar_lea.sflag [#allocation6], %s186
        %s188 = sand.u32 %s75, 1
        %s189 = smul.addr %s188, 32
        %s190 = scalar_lea.vmem [#allocation5], %s189
        // Predicated region
        $region33: #{tpu_custom_call.1} parent=27 // pred_check
          %p191 = pneg %p88
        $region34: #{tpu_custom_call.1} parent=27 // pred_check_branch
          %193 = sbr.rel (%p191) target = $region36
        $region35: #{tpu_custom_call.1} parent=27 // pred_region
          %194 = dma.done %s187, 512
        $region36: #{tpu_custom_call.1} parent=27 // pred_fallthru
          _
        %p195 = pneg %p60
        %p196 = pneg %p57
        %s197 = sand.u32 %s75, 1
        %s198 = scalar_lea.sflag [#allocation6], %s197
        %s199 = sand.u32 %s75, 1
        %s200 = smul.addr %s199, 32
        %s201 = scalar_lea.vmem [#allocation5], %s200
        %p202 = pneg %p88
        %p203 = pneg %p85
        %p204 = pneg %p118
        %p205 = pneg %p115
        %s206 = sand.u32 %s105, 1
        %s207 = scalar_lea.sflag [#allocation4], %s206
        %s208 = sand.u32 %s105, 1
        %s209 = smul.addr %s208, 16
        %s210 = scalar_lea.vmem [#allocation7], %s209
        %s211 = smul.u32 2, %s25
        %s212 = smul.u32 2, %s25
        %v213 = vld [vmem:[#allocation2] sm:$0xff]
        %v214 = vld [vmem:[#allocation2 + $0x8] sm:$0xff]
        %v215 = vld [vmem:[%s190] sm:$0xff]
        %v216 = vld [vmem:[%s190 + $0x8] sm:$0xff]
        %v217 = vld [vmem:[%s190 + $0x10] sm:$0xff]
        %v218 = vld [vmem:[%s190 + $0x18] sm:$0xff]
        %vm219 = vcmask 261120
        %v221 = vsel %vm219, %v213, 0
        %v224 = vsel %vm219, %v214, 0
        %226 = vmatprep.subr.mxu0 0.0
        %227 = vmatpush1.msra.mxu0 0.0
        %228 = vmatprep.subr.mxu0 0.0
        %229 = vmatpush1.msra.mxu0 0.0
        %230 = vmatprep.subr.mxu0 0.0
        %231 = vmatpush1.msra.mxu0 0.0
        %232 = vmatprep.subr.mxu0 0.0
        %233 = vmatpush1.msra.mxu0 0.0
        %234 = vmatprep.subr.mxu0 0.0
        %235 = vmatpush1.msra.mxu0 0.0
        %236 = vmatprep.subr.mxu0 0.0
        %237 = vmatpush1.msra.mxu0 0.0
        %238 = vmatprep.subr.mxu0 0.0
        %239 = vmatpush1.msra.mxu0 0.0
        %240 = vmatprep.subr.mxu0 0.0
        %241 = vmatpush1.msra.mxu0 0.0
        %242 = vmatprep.subr.mxu0 0.0
        %243 = vmatpush1.msra.mxu0 0.0
        %244 = vmatprep.subr.mxu0 0.0
        %245 = vmatpush1.msra.mxu0 0.0
        %246 = vmatprep.subr.mxu0 0.0
        %247 = vmatpush1.msra.mxu0 0.0
        %248 = vmatprep.subr.mxu0 0.0
        %249 = vmatpush1.msra.mxu0 0.0
        %250 = vmatprep.subr.mxu0 0.0
        %251 = vmatpush1.msra.mxu0 %v218
        %252 = vmatprep.subr.mxu0 0.0
        %253 = vmatpush1.msra.mxu0 %v217
        %254 = vmatprep.subr.mxu0 0.0
        %255 = vmatpush1.msra.mxu0 %v216
        %256 = vmatprep.subr.mxu0 0.0
        %257 = vmatpush1.msra.mxu0 %v215
        %258 = vmatprep.subr.mxu0 0.0
        %259 = vmatpush2.msra.mxu0 0.0
        %260 = vmatprep.subr.mxu0 0.0
        %261 = vmatpush2.msra.mxu0 0.0
        %262 = vmatprep.subr.mxu0 0.0
        %263 = vmatpush2.msra.mxu0 0.0
        %264 = vmatprep.subr.mxu0 0.0
        %265 = vmatpush2.msra.mxu0 0.0
        %266 = vmatprep.subr.mxu0 0.0
        %267 = vmatpush2.msra.mxu0 0.0
        %268 = vmatprep.subr.mxu0 0.0
        %269 = vmatpush2.msra.mxu0 0.0
        %270 = vmatprep.subr.mxu0 0.0
        %271 = vmatpush2.msra.mxu0 0.0
        %272 = vmatprep.subr.mxu0 0.0
        %273 = vmatpush2.msra.mxu0 0.0
        %274 = vmatprep.subr.mxu0 0.0
        %275 = vmatpush2.msra.mxu0 0.0
        %276 = vmatprep.subr.mxu0 0.0
        %277 = vmatpush2.msra.mxu0 0.0
        %278 = vmatprep.subr.mxu0 0.0
        %279 = vmatpush2.msra.mxu0 0.0
        %280 = vmatprep.subr.mxu0 0.0
        %281 = vmatpush2.msra.mxu0 0.0
        %282 = vmatprep.subr.mxu0 0.0
        %283 = vmatpush2.msra.mxu0 0.0
        %284 = vmatprep.subr.mxu0 0.0
        %285 = vmatpush2.msra.mxu0 0.0
        %286 = vmatprep.subr.mxu0 0.0
        %287 = vmatpush2.msra.mxu0 0.0
        %288 = vmatprep.subr.mxu0 0.0
        %289 = vmatpush2.msra.mxu0 0.0
        %290 = vmatprep.mubr.f32.mxu0 0.0
        %291 = vmatmul.mubr.f32.gmra.mxu0 %v221
        %v292 = vpop.f32.mrf.mxu0
        %v293 = vadd.f32 0.0, %v292
        %v294 = vpop.f32.mrf.mxu0
        %295 = vmatprep.mubr.f32.mxu0 0.0
        %296 = vmatmul.mubr.f32.gmra.mxu0 %v224
        %v297 = vpop.f32.mrf.mxu0
        %v298 = vadd.f32 0.0, %v297
        %v299 = vpop.f32.mrf.mxu0
        %300 = vdwg.mxu0
        %301 = vst.msk [vmem:[%s210] sm:$0xff] %vm219, %v293
        %302 = vst.msk [vmem:[%s210 + $0x8] sm:$0xff] %vm219, %v298
        %s303 = sand.u32 %s105, 1
        %s304 = scalar_lea.sflag [#allocation4], %s303
        %s305 = sand.u32 %s105, 1
        %s306 = smul.addr %s305, 16
        %s307 = scalar_lea.vmem [#allocation7], %s306
        // Predicated region
        $region37: #{tpu_custom_call.1} parent=27 // pred_check
          %p308 = pneg %p115
        $region38: #{tpu_custom_call.1} parent=27 // pred_check_branch
          %310 = sbr.rel (%p308) target = $region40
        $region39: #{tpu_custom_call.1} parent=27 // pred_region
          %s311 = smul.u32 2, %s25
          %s313 = ssub.s32 256, 256
          %314 = vsyncadd %s304, %s313
          %s315 = sadd.s32 %s27, %s311
          %s316 = smul.addr %s26, 2
          %s317 = sadd.s32 %s315, %s316
          %s318 = smul.addr %s317, 128
          %s319 = scalar_lea.hbm %s2, %s318
          %s320 = sshll.u32 %s307, 4
          %s321 = int_to_ptr.vmem [resolvable:$true] %s320
          %326 = dma.vmem_to_hbm [thread:$0]  %s321, 256, %s319, %s304, 128, 128, 8
        $region40: #{tpu_custom_call.1} parent=27 // pred_fallthru
          _
      $region28: #{tpu_custom_call.1} parent=5 // pred_fallthru
        _
      %p327 = scmp.le.s32.totalorder 2, %s15
      // Predicated region
      $region41: #{tpu_custom_call.1} parent=5 // pred_check
        %p328 = pneg %p327
      $region42: #{tpu_custom_call.1} parent=5 // pred_check_branch
        %330 = sbr.rel (%p328) target = $region44
      $region43: #{tpu_custom_call.1} parent=5 // pred_region
        %s331 = ssub.s32 %s15, 2
        // Predicated region
        $region45: #{tpu_custom_call.1} parent=43 // pred_check
          %p332 = pneg %p121
        $region46: #{tpu_custom_call.1} parent=43 // pred_check_branch
          %334 = sbr.rel (%p332) target = $region48
        $region47: #{tpu_custom_call.1} parent=43 // pred_region
          %s335 = sand.u32 %s106, 1
          %s336 = scalar_lea.sflag [#allocation4], %s335
          %s337 = sand.u32 %s106, 1
          %s338 = smul.addr %s337, 16
          %s339 = scalar_lea.vmem [#allocation7], %s338
          %340 = dma.done %s336, 256
        $region48: #{tpu_custom_call.1} parent=43 // pred_fallthru
          _
      $region44: #{tpu_custom_call.1} parent=5 // pred_fallthru
        _
    $region6: #{tpu_custom_call.1} parent=1 // loop_footer
      %s19 = sadd.s32 1, %s15
    $region7: #{tpu_custom_call.1} parent=1 // loop_footer_branch
      %14 = sbr.rel target = $region3
    $region8: #{tpu_custom_call.1} parent=1 // loop_exit
      _
    %341 = vsyncpa [#allocation3], 1
    %s342 = scalar_lea.sflag [#allocation3], 1
    %343 = vsyncpa %s342, 1
    %344 = vsyncpa [#allocation6], 1
    %s345 = scalar_lea.sflag [#allocation6], 1
    %346 = vsyncpa %s345, 1
    %347 = vsyncpa [#allocation4], 1
    %s348 = scalar_lea.sflag [#allocation4], 1
    %349 = vsyncpa %s348, 1

</llo_original>
